<compile_context>
chip_gen: v6e
topology: v6e:2x2x1
jax: 0.10.0
libtpu: 0.0.40
codegen_flags: <defaults>
</compile_context>

<pallas_src>
import math
from functools import partial

import jax
import jax.numpy as jnp
from jax.experimental import pallas as pl
from jax.experimental.pallas import tpu as pltpu


def make_positional_encoding(d_model: int, max_len: int = 5000) -> jnp.ndarray:
    """Deterministic buffer init, identical to the PyTorch __init__ (even d_model)."""
    position = jnp.arange(max_len, dtype=jnp.float32)[:, None]            # (max_len, 1)
    div_term = jnp.exp(
        jnp.arange(0, d_model, 2, dtype=jnp.float32) * (-math.log(10000.0) / d_model)
    )                                                                     # (ceil(D/2),)
    angles = position * div_term                                          # (max_len, ceil(D/2))
    pe = jnp.zeros((max_len, d_model), dtype=jnp.float32)
    pe = pe.at[:, 0::2].set(jnp.sin(angles))
    pe = pe.at[:, 1::2].set(jnp.cos(angles)[:, : d_model // 2])           # guard odd D
    # unsqueeze(0).transpose(0, 1) -> (max_len, 1, d_model)
    return pe[:, None, :]


# --------------------------------------------------------------------------- kernels
def _pe_add_kernel_2d(x_ref, pe_ref, o_ref, *, batch: int):
    # x_ref/o_ref: (tS, B*D) lane-dense tiles; pe_ref: (tS, D) dense tile.
    pe = pe_ref[...]
    if batch > 1:
        # Replicate pe across batch along lanes (D is a multiple of 128 on this
        # path, so every concat offset is lane-aligned). Pure VPU/VMEM work,
        # hidden under the HBM DMAs of this bandwidth-bound kernel.
        pe = jnp.concatenate([pe] * batch, axis=-1)                       # (tS, B*D)
    o_ref[...] = (x_ref[...] + pe).astype(o_ref.dtype)


def _pe_add_kernel_3d(x_ref, pe_ref, o_ref):
    # x_ref/o_ref: (tS, B, D); pe_ref: (tS, 1, D) -> broadcast over batch.
    o_ref[...] = (x_ref[...] + pe_ref[...]).astype(o_ref.dtype)


# --------------------------------------------------------------------------- helpers
def _choose_row_tile(n_rows: int, row_bytes: int, sublane_mult: int,
                     target_bytes: int) -> int:
    """Largest sequence-row tile whose bytes stay near target, sublane-aligned."""
    rows = max(1, target_bytes // max(row_bytes, 1))
    if rows >= n_rows:
        return n_rows
    rows = max(sublane_mult, rows - rows % sublane_mult)
    return min(rows, n_rows)


def _vmem_limit(need_bytes: int) -> int:
    # 48 MiB cap is safe on all generations (v7x physical VMEM is 64 MiB);
    # always leave headroom above the actual double-buffered need.
    limit = max(32 << 20, min(48 << 20, need_bytes * 5 // 4))
    return max(limit, need_bytes + (4 << 20))


# --------------------------------------------------------------------------- wrapper
def positional_encoding_forward(x: jnp.ndarray, pe: jnp.ndarray,
                                *, target_tile_bytes: int = 8 << 20) -> jnp.ndarray:
    """x: (S, B, D); pe: (max_len, 1, D). Returns x + pe[:S] (broadcast over B)."""
    S, B, D = x.shape
    max_len = pe.shape[0]
    if S > max_len:
        raise ValueError(f"sequence length {S} exceeds max_len {max_len}")

    itemsize = jnp.dtype(x.dtype).itemsize
    sublane_mult = max(8, 32 // itemsize)            # 8 for f32, 16 for bf16, 32 for int8
    row_bytes = B * D * itemsize
    tS = _choose_row_tile(S, row_bytes, sublane_mult, target_tile_bytes)
    n_blocks = pl.cdiv(S, tS)

    pe = pe.astype(x.dtype)
    # Rare edge case: if the last (partial) S block would index pe rows past
    # max_len, pad pe so BlockSpec indexing stays in bounds.
    pad_rows = max(0, n_blocks * tS - max_len)

    cost = pl.CostEstimate(
        flops=S * B * D,
        transcendentals=0,
        bytes_accessed=2 * S * B * D * itemsize + S * D * itemsize,
    )

    use_2d = (B == 1) or (D % 128 == 0)

    if use_2d:
        # Lane-dense path: fold batch into the lane axis (free row-major view).
        x2d = x.reshape(S, B * D)
        pe2d = pe.reshape(max_len, D)                # dense: no size-1 sublane padding
        if pad_rows:
            pe2d = jnp.pad(pe2d, ((0, pad_rows), (0, 0)))

        x_tile_bytes = tS * row_bytes
        pe_tile_bytes = tS * D * itemsize
        vmem_need = 2 * (2 * x_tile_bytes + pe_tile_bytes)

        out2d = pl.pallas_call(
            partial(_pe_add_kernel_2d, batch=B),
            out_shape=jax.ShapeDtypeStruct((S, B * D), x.dtype),
            grid=(n_blocks,),
            in_specs=[
                pl.BlockSpec((tS, B * D), lambda i: (i, 0)),
                pl.BlockSpec((tS, D), lambda i: (i, 0)),
            ],
            out_specs=pl.BlockSpec((tS, B * D), lambda i: (i, 0)),
            compiler_params=pltpu.CompilerParams(
                dimension_semantics=("parallel",),
                vmem_limit_bytes=_vmem_limit(vmem_need),
            ),
            cost_estimate=cost,
        )(x2d, pe2d)
        return out2d.reshape(S, B, D)

    # Fallback path (small / non-128-multiple d_model): 3-D tiles, broadcast add.
    if pad_rows:
        pe = jnp.pad(pe, ((0, pad_rows), (0, 0), (0, 0)))

    x_tile_bytes = tS * max(B, 8) * D * itemsize     # B < 8 pads to 8 sublanes
    pe_tile_bytes = tS * 8 * D * itemsize            # (tS, 1, D) pads sublane 1 -> 8
    vmem_need = 2 * (2 * x_tile_bytes + pe_tile_bytes)

    return pl.pallas_call(
        _pe_add_kernel_3d,
        out_shape=jax.ShapeDtypeStruct((S, B, D), x.dtype),
        grid=(n_blocks,),
        in_specs=[
            pl.BlockSpec((tS, B, D), lambda i: (i, 0, 0)),
            pl.BlockSpec((tS, 1, D), lambda i: (i, 0, 0)),
        ],
        out_specs=pl.BlockSpec((tS, B, D), lambda i: (i, 0, 0)),
        compiler_params=pltpu.CompilerParams(
            dimension_semantics=("parallel",),
            vmem_limit_bytes=_vmem_limit(vmem_need),
        ),
        cost_estimate=cost,
    )(x, pe)


# --------------------------------------------------------------------------- test
if __name__ == "__main__":
    key = jax.random.PRNGKey(0)
    k1, k2, k3 = jax.random.split(key, 3)

    # Case 1: small, non-lane-aligned d_model -> 3-D broadcast path.
    # Small target tile forces a multi-block grid with a partial last block.
    S1, B1, D1, ML1 = 20, 2, 32, 64
    x1 = jax.random.normal(k1, (S1, B1, D1), dtype=jnp.float32)
    pe1 = make_positional_encoding(d_model=D1, max_len=ML1)
    out1 = jax.block_until_ready(
        positional_encoding_forward(x1, pe1, target_tile_bytes=2048))
    ref1 = x1 + pe1[:S1]
    assert out1.shape == (S1, B1, D1)
    assert jnp.allclose(out1, ref1, atol=1e-6, rtol=1e-6)

    # Case 2: lane-aligned d_model -> 2-D folded (lane-dense) path, 6-block grid.
    S2, B2, D2, ML2 = 48, 2, 128, 64
    x2 = jax.random.normal(k2, (S2, B2, D2), dtype=jnp.float32)
    pe2 = make_positional_encoding(d_model=D2, max_len=ML2)
    out2 = jax.block_until_ready(
        positional_encoding_forward(x2, pe2, target_tile_bytes=8 * 1024))
    ref2 = x2 + pe2[:S2]
    assert out2.shape == (S2, B2, D2)
    assert jnp.allclose(out2, ref2, atol=1e-6, rtol=1e-6)

    # Case 3: batch of 1, single block (default tile target), 2-D path.
    S3, B3, D3, ML3 = 16, 1, 64, 32
    x3 = jax.random.normal(k3, (S3, B3, D3), dtype=jnp.float32)
    pe3 = make_positional_encoding(d_model=D3, max_len=ML3)
    out3 = jax.block_until_ready(positional_encoding_forward(x3, pe3))
    ref3 = x3 + pe3[:S3]
    assert out3.shape == (S3, B3, D3)
    assert jnp.allclose(out3, ref3, atol=1e-6, rtol=1e-6)

    print("KERNEL_OK")
</pallas_src>

<mosaic_0001>
module attributes {stable_mosaic.version = 11 : i64} {
  func.func @_pe_add_kernel_3d(%arg0: i32, %arg1: memref<8x2x32xf32, #tpu.memory_space<vmem>>, %arg2: memref<8x1x32xf32, #tpu.memory_space<vmem>>, %arg3: memref<8x2x32xf32, #tpu.memory_space<vmem>>) attributes {dimension_semantics = [#tpu.dimension_semantics<parallel>], iteration_bounds = array<i64: 3>, scalar_prefetch = 0 : i64, scratch_operands = 0 : i64, tpu.core_type = #tpu.core_type<tc>, window_params = [{transform_indices = @transform_0, window_bounds = array<i64: 8, 2, 32>}, {transform_indices = @transform_1, window_bounds = array<i64: 8, 1, 32>}, {transform_indices = @transform_2, window_bounds = array<i64: 8, 2, 32>}]} {
    %c0 = arith.constant 0 : index
    %c0_0 = arith.constant 0 : index
    %c0_1 = arith.constant 0 : index
    %0 = vector.load %arg1[%c0, %c0_0, %c0_1] : memref<8x2x32xf32, #tpu.memory_space<vmem>>, vector<8x2x32xf32>
    %c0_2 = arith.constant 0 : index
    %c0_3 = arith.constant 0 : index
    %c0_4 = arith.constant 0 : index
    %1 = vector.load %arg2[%c0_2, %c0_3, %c0_4] : memref<8x1x32xf32, #tpu.memory_space<vmem>>, vector<8x1x32xf32>
    %2 = vector.broadcast %1 : vector<8x1x32xf32> to vector<8x2x32xf32>
    %3 = arith.addf %0, %2 : vector<8x2x32xf32>
    %c0_5 = arith.constant 0 : index
    %c0_6 = arith.constant 0 : index
    %c0_7 = arith.constant 0 : index
    %4 = vector.load %arg3[%c0_5, %c0_6, %c0_7] : memref<8x2x32xf32, #tpu.memory_space<vmem>>, vector<8x2x32xf32>
    tpu.vector_store %arg3[%c0_5, %c0_6, %c0_7], %3 {strides = array<i32>} : memref<8x2x32xf32, #tpu.memory_space<vmem>>, vector<8x2x32xf32>,
    return
  }
  func.func @transform_0(%arg0: i32) -> (i32, i32, i32) {
    %c0_i32 = arith.constant 0 : i32
    %c0_i32_0 = arith.constant 0 : i32
    %c0_i32_1 = arith.constant 0 : i32
    return %arg0, %c0_i32, %c0_i32_0 : i32, i32, i32
  }
  func.func @transform_1(%arg0: i32) -> (i32, i32, i32) {
    %c0_i32 = arith.constant 0 : i32
    %c0_i32_0 = arith.constant 0 : i32
    %c0_i32_1 = arith.constant 0 : i32
    return %arg0, %c0_i32, %c0_i32_0 : i32, i32, i32
  }
  func.func @transform_2(%arg0: i32) -> (i32, i32, i32) {
    %c0_i32 = arith.constant 0 : i32
    %c0_i32_0 = arith.constant 0 : i32
    %c0_i32_1 = arith.constant 0 : i32
    return %arg0, %c0_i32, %c0_i32_0 : i32, i32, i32
  }
}

</mosaic_0001>

<llo_original>
// kernel: tpu_custom_call.1
$region0: #{tpu_custom_call.1}
  #allocation0 [shape = 'u32[]', space=smem, size = 0x4, offset = 0x4, fixed_abs, tag = 'smem constant byte address 0x4 - core index']
  #allocation1 [shape = 'u32[144,128]{1,0:T(1,128)}', space=vmem, size = 0x12000, scoped, tag = 'internal scratch']
  %s0 = inlined_call_operand.vmem [shape: f32[20,2,32], index: 0, kind: input, shape index: {}]
  %s1 = inlined_call_operand.vmem [shape: f32[64,1,32], index: 1, kind: input, shape index: {}]
  %s2 = inlined_call_operand.hbm [shape: f32[20,2,32], index: 2, kind: output, shape index: {}]
  %s3 = sld [smem:[#allocation0]]
  $region41: #{tpu_custom_call.1} parent=0
    _
  %s5 = ssub.s32 1, %s3
  %s6 = scalar_select 0, %s5, %s3
  $region1: #{tpu_custom_call.1} parent=0
    #allocation2 [shape = 'u8[16384]{0}', space=vmem, size = 0x4000, scoped, tag = 'output window, operand 0']
    #allocation3 [shape = 's32[2]{0}', space=sflag, size = 0x8, scoped, tag = 'scoped memory for tpu_custom_call.1']
    %7 = vsyncpa [#allocation3], 0
    %s8 = scalar_lea.sflag [#allocation3], 1
    %9 = vsyncpa %s8, 0
    loop: start=0, step=1, limit=5
    $region2: #{tpu_custom_call.1} parent=1 // loop_pre_header
      _
    $region3: #{tpu_custom_call.1} parent=1 // loop_header
      %s11 = sphi 0, %s15
      %p12 = scmp.ge.s32.totalorder %s11, 5
      %s21 = sphi 0, %s23
      %s24 = sphi 0, %s21
      %s25 = sphi 0, %s24
      %s41 = sphi 0, %s25
      %s47 = sphi 0, %s49
      %s50 = sphi 0, %s47
      %s51 = sphi 0, %s50
      %s67 = sphi 0, %s51
      %s73 = sphi 0, %s75
      %s76 = sphi 0, %s73
      %s77 = sphi 0, %s76
      %s93 = sphi 0, %s77
    $region4: #{tpu_custom_call.1} parent=1 // loop_header_branch
      %14 = sbr.rel (%p12) target = $region8
    $region5: #{tpu_custom_call.1} parent=1 // loop_body
      %s16 = ssub.s32 %s11, 1
      %s17 = ssub.s32 %s11, 2
      %s18 = sadd.s32 %s11, 1
      %s19 = ssub.s32 %s11, %s18
      %p20 = scmp.eq.s32.totalorder %s19, 0
      %s22 = sadd.s32 %s21, 1
      %s23 = scalar_select %p20, %s21, %s22
      %p26 = pneg %p20
      %p27 = scmp.eq.s32.totalorder %s11, 2
      %p28 = por %p26, %p27
      %p29 = scmp.ne.s32.totalorder %s21, %s24
      %p30 = scmp.eq.s32.totalorder %s11, 0
      %p31 = por %p29, %p30
      %p32 = scmp.ne.s32.totalorder %s21, %s24
      %p33 = scmp.eq.s32.totalorder %s16, 2
      %p34 = por %p32, %p33
      %p35 = scmp.ne.s32.totalorder %s24, %s25
      %p36 = scmp.eq.s32.totalorder %s16, 0
      %p37 = por %p35, %p36
      %p38 = scmp.ne.s32.totalorder %s24, %s25
      %p39 = scmp.eq.s32.totalorder %s17, 2
      %p40 = por %p38, %p39
      %p42 = scmp.ne.s32.totalorder %s25, %s41
      %p43 = scmp.eq.s32.totalorder %s17, 0
      %p44 = por %p42, %p43
      %s45 = ssub.s32 %s11, %s18
      %p46 = scmp.eq.s32.totalorder %s45, 0
      %s48 = sadd.s32 %s47, 1
      %s49 = scalar_select %p46, %s47, %s48
      %p52 = pneg %p46
      %p53 = scmp.eq.s32.totalorder %s11, 2
      %p54 = por %p52, %p53
      %p55 = scmp.ne.s32.totalorder %s47, %s50
      %p56 = scmp.eq.s32.totalorder %s11, 0
      %p57 = por %p55, %p56
      %p58 = scmp.ne.s32.totalorder %s47, %s50
      %p59 = scmp.eq.s32.totalorder %s16, 2
      %p60 = por %p58, %p59
      %p61 = scmp.ne.s32.totalorder %s50, %s51
      %p62 = scmp.eq.s32.totalorder %s16, 0
      %p63 = por %p61, %p62
      %p64 = scmp.ne.s32.totalorder %s50, %s51
      %p65 = scmp.eq.s32.totalorder %s17, 2
      %p66 = por %p64, %p65
      %p68 = scmp.ne.s32.totalorder %s51, %s67
      %p69 = scmp.eq.s32.totalorder %s17, 0
      %p70 = por %p68, %p69
      %s71 = ssub.s32 %s11, %s18
      %p72 = scmp.eq.s32.totalorder %s71, 0
      %s74 = sadd.s32 %s73, 1
      %s75 = scalar_select %p72, %s73, %s74
      %p78 = pneg %p72
      %p79 = scmp.eq.s32.totalorder %s11, 2
      %p80 = por %p78, %p79
      %p81 = scmp.ne.s32.totalorder %s73, %s76
      %p82 = scmp.eq.s32.totalorder %s11, 0
      %p83 = por %p81, %p82
      %p84 = scmp.ne.s32.totalorder %s73, %s76
      %p85 = scmp.eq.s32.totalorder %s16, 2
      %p86 = por %p84, %p85
      %p87 = scmp.ne.s32.totalorder %s76, %s77
      %p88 = scmp.eq.s32.totalorder %s16, 0
      %p89 = por %p87, %p88
      %p90 = scmp.ne.s32.totalorder %s76, %s77
      %p91 = scmp.eq.s32.totalorder %s17, 2
      %p92 = por %p90, %p91
      %p94 = scmp.ne.s32.totalorder %s77, %s93
      %p95 = scmp.eq.s32.totalorder %s17, 0
      %p96 = por %p94, %p95
      %p97 = scmp.le.s32.totalorder 1, %s11
      %p98 = scmp.lt.s32.totalorder %s11, 4
      %p99 = pnand %p97, %p98
      %p100 = pneg %p99
      // Predicated region
      $region9: #{tpu_custom_call.1} parent=5 // pred_check
        _
      $region10: #{tpu_custom_call.1} parent=5 // pred_check_branch
        %102 = sbr.rel (%p99) target = $region12
      $region11: #{tpu_custom_call.1} parent=5 // pred_region
        %s103 = ssub.s32 %s11, 1
      $region12: #{tpu_custom_call.1} parent=5 // pred_fallthru
        _
      %p104 = scmp.lt.s32.totalorder %s11, 3
      // Predicated region
      $region13: #{tpu_custom_call.1} parent=5 // pred_check
        %p105 = pneg %p104
      $region14: #{tpu_custom_call.1} parent=5 // pred_check_branch
        %107 = sbr.rel (%p105) target = $region16
      $region15: #{tpu_custom_call.1} parent=5 // pred_region
        // Predicated region
        $region17: #{tpu_custom_call.1} parent=15 // pred_check
          %p108 = pneg %p31
        $region18: #{tpu_custom_call.1} parent=15 // pred_check_branch
          %110 = sbr.rel (%p108) target = $region20
        $region19: #{tpu_custom_call.1} parent=15 // pred_region
          %s111 = smul.u32 8, %s11
          %s112 = ssub.s32 20, %s111
          %p113 = scmp.lt.s32.totalorder %s112, 8
          %s114 = scalar_select %p113, %s112, 8
          %s115 = smul.u32 32, %s114
          %p116 = scmp.lt.s32.totalorder %s111, 19
          %s117 = scalar_select %p116, %s111, 19
          %s118 = smul.addr %s117, 2
          %s119 = scalar_lea.vmem %s0, %s118
          %s120 = smul.u32 8, %s11
          %s121 = ssub.s32 20, %s120
          %p122 = scmp.lt.s32.totalorder %s121, 8
          %s123 = scalar_select %p122, %s121, 8
          %s124 = smul.u32 32, %s123
        $region20: #{tpu_custom_call.1} parent=15 // pred_fallthru
          _
        // Predicated region
        $region21: #{tpu_custom_call.1} parent=15 // pred_check
          %p125 = pneg %p57
        $region22: #{tpu_custom_call.1} parent=15 // pred_check_branch
          %127 = sbr.rel (%p125) target = $region24
        $region23: #{tpu_custom_call.1} parent=15 // pred_region
          %s128 = smul.u32 8, %s11
          %p129 = scmp.lt.s32.totalorder %s128, 63
          %s130 = scalar_select %p129, %s128, 63
          %s131 = scalar_lea.vmem %s1, %s130
          %s132 = smul.u32 8, %s11
        $region24: #{tpu_custom_call.1} parent=15 // pred_fallthru
          _
      $region16: #{tpu_custom_call.1} parent=5 // pred_fallthru
        _
      %p133 = scmp.le.s32.totalorder 1, %s11
      %p134 = scmp.lt.s32.totalorder %s11, 4
      %p135 = pnand %p133, %p134
      %p136 = pneg %p135
      // Predicated region
      $region25: #{tpu_custom_call.1} parent=5 // pred_check
        _
      $region26: #{tpu_custom_call.1} parent=5 // pred_check_branch
        %138 = sbr.rel (%p135) target = $region28
      $region27: #{tpu_custom_call.1} parent=5 // pred_region
        %s139 = ssub.s32 %s11, 1
        %s140 = smul.u32 8, %s16
        %s141 = ssub.s32 20, %s140
        %p142 = scmp.lt.s32.totalorder %s141, 8
        %s143 = scalar_select %p142, %s141, 8
        %s144 = smul.u32 32, %s143
        %p145 = scmp.lt.s32.totalorder %s140, 19
        %s146 = scalar_select %p145, %s140, 19
        %s147 = smul.addr %s146, 2
        %s148 = scalar_lea.vmem %s0, %s147
        %p149 = pneg %p37
        %p150 = pneg %p34
        %s151 = smul.u32 8, %s16
        %p152 = scmp.lt.s32.totalorder %s151, 63
        %s153 = scalar_select %p152, %s151, 63
        %s154 = scalar_lea.vmem %s1, %s153
        %p155 = pneg %p63
        %p156 = pneg %p60
        %p157 = pneg %p89
        %p158 = pneg %p86
        %s159 = sand.u32 %s76, 1
        %s160 = scalar_lea.sflag [#allocation3], %s159
        %s161 = sand.u32 %s76, 1
        %s162 = smul.addr %s161, 16
        %s163 = scalar_lea.vmem [#allocation2], %s162
        %s164 = smul.u32 8, %s16
        %s165 = ssub.s32 20, %s164
        %p166 = scmp.lt.s32.totalorder %s165, 8
        %s167 = scalar_select %p166, %s165, 8
        %s168 = smul.u32 32, %s167
        %p169 = scmp.lt.s32.totalorder %s164, 19
        %s170 = scalar_select %p169, %s164, 19
        %s171 = smul.addr %s170, 2
        %s172 = scalar_lea.vmem %s0, %s171
        %s173 = smul.u32 8, %s16
        %s174 = ssub.s32 20, %s173
        %p175 = scmp.lt.s32.totalorder %s174, 8
        %s176 = scalar_select %p175, %s174, 8
        %s177 = smul.u32 32, %s176
        %s178 = smul.u32 8, %s16
        %p179 = scmp.lt.s32.totalorder %s178, 63
        %s180 = scalar_select %p179, %s178, 63
        %s181 = scalar_lea.vmem %s1, %s180
        %s182 = smul.u32 8, %s16
        %s183 = smul.u32 8, %s16
        %s184 = ssub.s32 20, %s183
        %p185 = scmp.lt.s32.totalorder %s184, 8
        %s186 = scalar_select %p185, %s184, 8
        %s187 = smul.u32 32, %s186
        %v188 = vld [vmem:[%s172] sm:$0x3]
        %v189 = vld [vmem:[%s172 + $0x2] sm:$0x3]
        %v190 = vld [vmem:[%s172 + $0x4] sm:$0x3]
        %v191 = vld [vmem:[%s172 + $0x6] sm:$0x3]
        %v192 = vld [vmem:[%s172 + $0x8] sm:$0x3]
        %v193 = vld [vmem:[%s172 + $0xa] sm:$0x3]
        %v194 = vld [vmem:[%s172 + $0xc] sm:$0x3]
        %v195 = vld [vmem:[%s172 + $0xe] sm:$0x3]
        %v196 = vld [vmem:[%s181] sm:$0x1]
        %v197 = vld [vmem:[%s181 + $0x1] sm:$0x1]
        %v198 = vld [vmem:[%s181 + $0x2] sm:$0x1]
        %v199 = vld [vmem:[%s181 + $0x3] sm:$0x1]
        %v200 = vld [vmem:[%s181 + $0x4] sm:$0x1]
        %v201 = vld [vmem:[%s181 + $0x5] sm:$0x1]
        %v202 = vld [vmem:[%s181 + $0x6] sm:$0x1]
        %v203 = vld [vmem:[%s181 + $0x7] sm:$0x1]
        %v212 = vlaneseq
        %v213 = vshrl.u32 %v212, 7
        %v214 = vsub.s32 0, %v213
        %v215 = vrot.slane %v196, %v214
        %v216 = vlaneseq
        %v217 = vshrl.u32 %v216, 7
        %v218 = vsub.s32 0, %v217
        %v219 = vrot.slane %v197, %v218
        %v220 = vlaneseq
        %v221 = vshrl.u32 %v220, 7
        %v222 = vsub.s32 0, %v221
        %v223 = vrot.slane %v198, %v222
        %v224 = vlaneseq
        %v225 = vshrl.u32 %v224, 7
        %v226 = vsub.s32 0, %v225
        %v227 = vrot.slane %v199, %v226
        %v228 = vlaneseq
        %v229 = vshrl.u32 %v228, 7
        %v230 = vsub.s32 0, %v229
        %v231 = vrot.slane %v200, %v230
        %v232 = vlaneseq
        %v233 = vshrl.u32 %v232, 7
        %v234 = vsub.s32 0, %v233
        %v235 = vrot.slane %v201, %v234
        %v236 = vlaneseq
        %v237 = vshrl.u32 %v236, 7
        %v238 = vsub.s32 0, %v237
        %v239 = vrot.slane %v202, %v238
        %v240 = vlaneseq
        %v241 = vshrl.u32 %v240, 7
        %v242 = vsub.s32 0, %v241
        %v243 = vrot.slane %v203, %v242
        %v252 = vadd.f32 %v188, %v215
        %v253 = vadd.f32 %v189, %v219
        %v254 = vadd.f32 %v190, %v223
        %v255 = vadd.f32 %v191, %v227
        %v256 = vadd.f32 %v192, %v231
        %v257 = vadd.f32 %v193, %v235
        %v258 = vadd.f32 %v194, %v239
        %v259 = vadd.f32 %v195, %v243
        %vm260 = vcmask 254976
        %261 = vst.msk [vmem:[%s163] sm:$0x3] %vm260, %v252
        %262 = vst.msk [vmem:[%s163 + $0x2] sm:$0x3] %vm260, %v253
        %263 = vst.msk [vmem:[%s163 + $0x4] sm:$0x3] %vm260, %v254
        %264 = vst.msk [vmem:[%s163 + $0x6] sm:$0x3] %vm260, %v255
        %265 = vst.msk [vmem:[%s163 + $0x8] sm:$0x3] %vm260, %v256
        %266 = vst.msk [vmem:[%s163 + $0xa] sm:$0x3] %vm260, %v257
        %267 = vst.msk [vmem:[%s163 + $0xc] sm:$0x3] %vm260, %v258
        %268 = vst.msk [vmem:[%s163 + $0xe] sm:$0x3] %vm260, %v259
        %s269 = sand.u32 %s76, 1
        %s270 = scalar_lea.sflag [#allocation3], %s269
        %s271 = sand.u32 %s76, 1
        %s272 = smul.addr %s271, 16
        %s273 = scalar_lea.vmem [#allocation2], %s272
        // Predicated region
        $region29: #{tpu_custom_call.1} parent=27 // pred_check
          %p274 = pneg %p86
        $region30: #{tpu_custom_call.1} parent=27 // pred_check_branch
          %276 = sbr.rel (%p274) target = $region32
        $region31: #{tpu_custom_call.1} parent=27 // pred_region
          %s277 = smul.u32 8, %s16
          %s278 = ssub.s32 20, %s277
          %p279 = scmp.lt.s32.totalorder %s278, 8
          %s280 = scalar_select %p279, %s278, 8
          %s281 = smul.u32 32, %s280
          %s283 = ssub.s32 256, %s281
          %284 = vsyncadd %s270, %s283
          %p285 = scmp.ne.s32.totalorder 0, %s281
          %s286 = smul.addr %s277, 32
          %s287 = scalar_lea.hbm %s2, %s286
          %s288 = smul.u32 2, %s280
          %s289 = sshll.u32 %s273, 4
          %s290 = int_to_ptr.vmem [resolvable:$true] %s289
          %s291 = sshll.u32 %s288, 4
          %295 = dma.vmem_to_hbm [thread:$0]  (%p285), %s290, %s291, %s287, %s270, 32, 32, 2
        $region32: #{tpu_custom_call.1} parent=27 // pred_fallthru
          _
      $region28: #{tpu_custom_call.1} parent=5 // pred_fallthru
        _
      %p296 = scmp.le.s32.totalorder 2, %s11
      // Predicated region
      $region33: #{tpu_custom_call.1} parent=5 // pred_check
        %p297 = pneg %p296
      $region34: #{tpu_custom_call.1} parent=5 // pred_check_branch
        %299 = sbr.rel (%p297) target = $region36
      $region35: #{tpu_custom_call.1} parent=5 // pred_region
        %s300 = ssub.s32 %s11, 2
        // Predicated region
        $region37: #{tpu_custom_call.1} parent=35 // pred_check
          %p301 = pneg %p92
        $region38: #{tpu_custom_call.1} parent=35 // pred_check_branch
          %303 = sbr.rel (%p301) target = $region40
        $region39: #{tpu_custom_call.1} parent=35 // pred_region
          %s304 = sand.u32 %s77, 1
          %s305 = scalar_lea.sflag [#allocation3], %s304
          %s306 = sand.u32 %s77, 1
          %s307 = smul.addr %s306, 16
          %s308 = scalar_lea.vmem [#allocation2], %s307
          %309 = dma.done %s305, 256
        $region40: #{tpu_custom_call.1} parent=35 // pred_fallthru
          _
      $region36: #{tpu_custom_call.1} parent=5 // pred_fallthru
        _
    $region6: #{tpu_custom_call.1} parent=1 // loop_footer
      %s15 = sadd.s32 1, %s11
    $region7: #{tpu_custom_call.1} parent=1 // loop_footer_branch
      %10 = sbr.rel target = $region3
    $region8: #{tpu_custom_call.1} parent=1 // loop_exit
      _
    %310 = vsyncpa [#allocation3], 1
    %s311 = scalar_lea.sflag [#allocation3], 1
    %312 = vsyncpa %s311, 1

</llo_original>
